<compile_context>
chip_gen: v6e
topology: v6e:2x2x1
jax: 0.10.0
libtpu: 0.0.40
codegen_flags: <defaults>
</compile_context>

<pallas_src>
import functools

import jax
import jax.numpy as jnp
from jax.experimental import pallas as pl
from jax.experimental.pallas import tpu as pltpu


# -----------------------------------------------------------------------------
# Kernels (pure elementwise, VPU, memory-bound)
# -----------------------------------------------------------------------------
def _valid_disp_kernel(disp_ref, out_ref, *, max_disparity):
    # Per-vreg upcast keeps the compare in f32 (v5e has no bf16 VALU) while the
    # HBM read stays at the narrow input dtype.
    d = disp_ref[...].astype(jnp.float32)
    valid = d > 0.0
    if max_disparity is not None:                      # static Python branch
        valid = jnp.logical_and(valid, d < float(max_disparity))
    out_ref[...] = valid.astype(out_ref.dtype)


def _valid_disp_mask_kernel(disp_ref, mask_ref, out_ref, *, max_disparity):
    d = disp_ref[...].astype(jnp.float32)
    m = mask_ref[...]
    if m.dtype != jnp.bool_:                           # static Python branch
        m = m.astype(jnp.float32) != 0.0
    valid = jnp.logical_and(m, d > 0.0)
    if max_disparity is not None:                      # static Python branch
        valid = jnp.logical_and(valid, d < float(max_disparity))
    out_ref[...] = valid.astype(out_ref.dtype)


# -----------------------------------------------------------------------------
# Tiling
# -----------------------------------------------------------------------------
def _pick_row_tile(H, row_tile=256):
    """Row-tile height.

    - Small inputs (H <= 64): use the full height; a block equal to the full
      array dim is always layout-legal, even for packed bool/i8 tiles.
    - Larger frames: a multiple of 32 (safe sublane granularity for
      f32/bf16/i8/bool) chosen so there are at least 2 row tiles (v7x has 2
      TensorCores sharing the parallel grid axes), capped at `row_tile` so
      double-buffered blocks stay far below the v7x 64 MiB VMEM.
    """
    if H <= 64:
        return H
    th = 32 * pl.cdiv(H, 64)          # ~H/2 rounded up to a multiple of 32
    return min(row_tile, th)


# -----------------------------------------------------------------------------
# Wrapper
# -----------------------------------------------------------------------------
def pallas_valid_disparity_mask(disparity, mask=None, max_disparity=256, *,
                                row_tile=256):
    """valid = mask & (disparity > 0) & (disparity < max_disparity), as bool.

    disparity: (H, W) or (N, H, W), any float dtype (read in native dtype).
    mask:      matching-shape bool/int array or None.
    Returns a bool array of the same (leading-batched) spatial shape.
    """
    squeeze_out = disparity.ndim == 2
    if squeeze_out:
        disparity = disparity[None]
        if mask is not None:
            mask = mask[None]
    N, H, W = disparity.shape
    th = _pick_row_tile(H, row_tile)
    grid = (N, pl.cdiv(H, th))

    # Leading batch dim is squeezed out of the kernel refs; full (lane-dense)
    # width so stores are unmasked vst.
    spec = pl.BlockSpec((None, th, W), lambda n, i: (n, i, 0))

    in_specs = [spec]
    args = [disparity]                                  # native dtype read
    if mask is None:
        kernel = functools.partial(_valid_disp_kernel,
                                   max_disparity=max_disparity)
    else:
        kernel = functools.partial(_valid_disp_mask_kernel,
                                   max_disparity=max_disparity)
        in_specs.append(spec)
        args.append(mask)                               # bool/i8, 1B/elem read

    out = pl.pallas_call(
        kernel,
        out_shape=jax.ShapeDtypeStruct((N, H, W), jnp.bool_),   # 1B/elem write
        grid=grid,
        in_specs=in_specs,
        out_specs=spec,
        compiler_params=pltpu.CompilerParams(
            dimension_semantics=("parallel", "parallel")),
    )(*args)
    return out[0] if squeeze_out else out


# -----------------------------------------------------------------------------
# Module forward (mirrors the PyTorch MakeValidDisparityMask.forward)
# -----------------------------------------------------------------------------
class MakeValidDisparityMask:
    def __init__(self, max_disparity=256):
        self.max_disparity = max_disparity

    def __call__(self, images, disparities, masks):
        n = len(disparities)
        results = [None] * n

        # Group views with identical (shape, disparity dtype, mask presence,
        # mask dtype) so compatible views run in ONE batched pallas_call.
        groups = {}
        for idx, (mask, disparity) in enumerate(zip(masks, disparities)):
            if disparity is None:
                if mask is None:
                    H, W = images[idx].shape[-2:]
                    results[idx] = jnp.ones((H, W), dtype=jnp.bool_)
                else:
                    results[idx] = mask          # passed through unchanged
                continue
            d = disparity
            if d.ndim == 3:                      # (1, H, W) -> (H, W); .squeeze(0)
                d = d[0]
            key = (d.shape, d.dtype, mask is not None,
                   None if mask is None else mask.dtype)
            groups.setdefault(key, []).append((idx, d, mask))

        for (_, _, has_mask, _), items in groups.items():
            if len(items) == 1:
                idx, d, mask = items[0]
                results[idx] = pallas_valid_disparity_mask(
                    d, mask, self.max_disparity)
            else:
                idxs = [it[0] for it in items]
                d_stk = jnp.stack([it[1] for it in items], axis=0)
                m_stk = (jnp.stack([it[2] for it in items], axis=0)
                         if has_mask else None)
                out = pallas_valid_disparity_mask(
                    d_stk, m_stk, self.max_disparity)
                for j, idx in enumerate(idxs):
                    results[idx] = out[j]

        return images, disparities, tuple(results)


# -----------------------------------------------------------------------------
if __name__ == "__main__":
    key = jax.random.PRNGKey(0)
    k1, k2, k3, k4, k5 = jax.random.split(key, 5)

    C, H, W = 4, 16, 16
    max_disparity = 256

    img_left = jax.random.normal(k1, (C, H, W), dtype=jnp.float32)
    img_right = jax.random.normal(k2, (C, H, W), dtype=jnp.float32)
    # values span below 0 and above max_disparity so both bounds fire
    disp_left = jax.random.uniform(k3, (1, H, W), minval=-20.0, maxval=300.0)
    disp_right = jax.random.uniform(
        k4, (1, H, W), minval=-20.0, maxval=300.0).astype(jnp.bfloat16)
    mask_left = jax.random.uniform(k5, (H, W)) > 0.3   # bool; right mask is None

    module = MakeValidDisparityMask(max_disparity=max_disparity)

    # --- test 1: mixed mask presence + mixed dtypes (two separate calls) -----
    out_images, out_disps, out_masks = module(
        images=(img_left, img_right),
        disparities=(disp_left, disp_right),
        masks=(mask_left, None),
    )
    jax.block_until_ready(out_masks)

    dl = disp_left[0]
    dr = disp_right[0].astype(jnp.float32)
    ref0 = jnp.logical_and(jnp.logical_and(mask_left, dl > 0), dl < max_disparity)
    ref1 = jnp.logical_and(dr > 0, dr < max_disparity)

    assert out_masks[0].shape == (H, W) and out_masks[0].dtype == jnp.bool_
    assert out_masks[1].shape == (H, W) and out_masks[1].dtype == jnp.bool_
    assert bool(jnp.all(out_masks[0] == ref0))
    assert bool(jnp.all(out_masks[1] == ref1))
    # images / disparities are passed through untouched
    assert out_images[0] is img_left and out_disps[1] is disp_right

    # --- test 2: both masks None, same dtype -> single batched (2,H,W) call --
    _, _, out_masks2 = module(
        images=(img_left, img_right),
        disparities=(disp_left, disp_left * -1.0),
        masks=(None, None),
    )
    jax.block_until_ready(out_masks2)
    ref2a = jnp.logical_and(dl > 0, dl < max_disparity)
    ref2b = jnp.logical_and(-dl > 0, -dl < max_disparity)
    assert bool(jnp.all(out_masks2[0] == ref2a))
    assert bool(jnp.all(out_masks2[1] == ref2b))

    print("KERNEL_OK")
</pallas_src>

<mosaic_0001>
module attributes {stable_mosaic.version = 11 : i64} {
  func.func @_valid_disp_mask_kernel(%arg0: i32, %arg1: i32, %arg2: memref<1x16x16xf32, #tpu.memory_space<vmem>>, %arg3: memref<1x16x16xi32, #tpu.memory_space<vmem>>, %arg4: memref<1x16x16xi32, #tpu.memory_space<vmem>>) attributes {dimension_semantics = [#tpu.dimension_semantics<parallel>, #tpu.dimension_semantics<parallel>], iteration_bounds = array<i64: 1, 1>, scalar_prefetch = 0 : i64, scratch_operands = 0 : i64, tpu.core_type = #tpu.core_type<tc>, window_params = [{transform_indices = @transform_0, window_bounds = array<i64: 1, 16, 16>}, {transform_indices = @transform_1, window_bounds = array<i64: 1, 16, 16>}, {transform_indices = @transform_2, window_bounds = array<i64: 1, 16, 16>}]} {
    %c0 = arith.constant 0 : index
    %c0_0 = arith.constant 0 : index
    %c0_1 = arith.constant 0 : index
    %0 = vector.load %arg2[%c0, %c0_0, %c0_1] : memref<1x16x16xf32, #tpu.memory_space<vmem>>, vector<1x16x16xf32>
    %1 = vector.shape_cast %0 : vector<1x16x16xf32> to vector<16x16xf32>
    %c0_2 = arith.constant 0 : index
    %c0_3 = arith.constant 0 : index
    %c0_4 = arith.constant 0 : index
    %2 = vector.load %arg3[%c0_2, %c0_3, %c0_4] : memref<1x16x16xi32, #tpu.memory_space<vmem>>, vector<1x16x16xi32>
    %3 = vector.shape_cast %2 : vector<1x16x16xi32> to vector<16x16xi32>
    %cst = arith.constant dense<0> : vector<16x16xi32>
    %4 = arith.cmpi ne, %3, %cst : vector<16x16xi32>
    %cst_5 = arith.constant 0.000000e+00 : f32
    %5 = vector.broadcast %cst_5 : f32 to vector<16x16xf32>
    %6 = arith.cmpf ogt, %1, %5 : vector<16x16xf32>
    %7 = arith.andi %4, %6 : vector<16x16xi1>
    %cst_6 = arith.constant 2.560000e+02 : f32
    %8 = vector.broadcast %cst_6 : f32 to vector<16x16xf32>
    %9 = arith.cmpf olt, %1, %8 : vector<16x16xf32>
    %10 = arith.andi %7, %9 : vector<16x16xi1>
    %c0_7 = arith.constant 0 : index
    %c0_8 = arith.constant 0 : index
    %c0_9 = arith.constant 0 : index
    %11 = vector.load %arg4[%c0_7, %c0_8, %c0_9] : memref<1x16x16xi32, #tpu.memory_space<vmem>>, vector<1x16x16xi32>
    %12 = arith.extui %10 : vector<16x16xi1> to vector<16x16xi32>
    %13 = vector.shape_cast %11 : vector<1x16x16xi32> to vector<16x16xi32>
    %14 = vector.shape_cast %12 : vector<16x16xi32> to vector<1x16x16xi32>
    %cst_10 = arith.constant dense<0> : vector<16x16xi32>
    %15 = arith.cmpi ne, %13, %cst_10 : vector<16x16xi32>
    tpu.vector_store %arg4[%c0_7, %c0_8, %c0_9], %14 {strides = array<i32>} : memref<1x16x16xi32, #tpu.memory_space<vmem>>, vector<1x16x16xi32>,
    return
  }
  func.func @transform_0(%arg0: i32, %arg1: i32) -> (i32, i32, i32) {
    %c0_i32 = arith.constant 0 : i32
    %c0_i32_0 = arith.constant 0 : i32
    return %arg0, %arg1, %c0_i32 : i32, i32, i32
  }
  func.func @transform_1(%arg0: i32, %arg1: i32) -> (i32, i32, i32) {
    %c0_i32 = arith.constant 0 : i32
    %c0_i32_0 = arith.constant 0 : i32
    return %arg0, %arg1, %c0_i32 : i32, i32, i32
  }
  func.func @transform_2(%arg0: i32, %arg1: i32) -> (i32, i32, i32) {
    %c0_i32 = arith.constant 0 : i32
    %c0_i32_0 = arith.constant 0 : i32
    return %arg0, %arg1, %c0_i32 : i32, i32, i32
  }
}

</mosaic_0001>

<llo_original>
// kernel: tpu_custom_call.1
$region0: #{tpu_custom_call.1}
  #allocation0 [shape = 'u32[]', space=smem, size = 0x4, offset = 0x4, fixed_abs, tag = 'smem constant byte address 0x4 - core index']
  #allocation1 [shape = 'u32[144,128]{1,0:T(1,128)}', space=vmem, size = 0x12000, scoped, tag = 'internal scratch']
  %s0 = inlined_call_operand.vmem [shape: f32[1,16,16], index: 0, kind: input, shape index: {}]
  %s1 = inlined_call_operand.vmem [shape: s32[1,16,16], index: 1, kind: input, shape index: {}]
  %s2 = inlined_call_operand.vmem [shape: s32[1,16,16], index: 2, kind: output, shape index: {}]
  %s3 = sld [smem:[#allocation0]]
  $region18: #{tpu_custom_call.1} parent=0
    _
  %s5 = ssub.s32 1, %s3
  %s6 = scalar_select 0, %s5, %s3
  // Predicated region
  $region2: #{tpu_custom_call.1} parent=0 // pred_check
    _
  $region3: #{tpu_custom_call.1} parent=0 // pred_check_branch
    %8 = sbr.rel (0) target = $region5
  $region4: #{tpu_custom_call.1} parent=0 // pred_region
    _
  $region5: #{tpu_custom_call.1} parent=0 // pred_fallthru
    _
  // Predicated region
  $region6: #{tpu_custom_call.1} parent=0 // pred_check
    _
  $region7: #{tpu_custom_call.1} parent=0 // pred_check_branch
    %10 = sbr.rel (0) target = $region9
  $region8: #{tpu_custom_call.1} parent=0 // pred_region
    _
  $region9: #{tpu_custom_call.1} parent=0 // pred_fallthru
    _
  %v11 = vld [vmem:[%s0] sm:$0xff]
  %v12 = vld [vmem:[%s0 + $0x8] sm:$0xff]
  %v13 = vld [vmem:[%s1] sm:$0xff]
  %v14 = vld [vmem:[%s1 + $0x8] sm:$0xff]
  %vm15 = vcmp.ne.s32.totalorder %v13, 0
  %vm16 = vcmp.ne.s32.totalorder %v14, 0
  %vm17 = vcmp.gt.f32.partialorder %v11, 0.0
  %vm18 = vcmp.gt.f32.partialorder %v12, 0.0
  %vm19 = vmand %vm15, %vm17
  %vm20 = vmand %vm16, %vm18
  %vm21 = vcmp.lt.f32.partialorder %v11, 256.0
  %vm22 = vcmp.lt.f32.partialorder %v12, 256.0
  %vm23 = vmand %vm19, %vm21
  %vm24 = vmand %vm20, %vm22
  %v25 = vsel %vm23, 1, 0
  %v26 = vsel %vm24, 1, 0
  %vm27 = vcmask 130048
  %28 = vst.msk [vmem:[%s2] sm:$0xff] %vm27, %v25
  %29 = vst.msk [vmem:[%s2 + $0x8] sm:$0xff] %vm27, %v26
  // Predicated region
  $region10: #{tpu_custom_call.1} parent=0 // pred_check
    _
  $region11: #{tpu_custom_call.1} parent=0 // pred_check_branch
    %31 = sbr.rel (0) target = $region13
  $region12: #{tpu_custom_call.1} parent=0 // pred_region
    _
  $region13: #{tpu_custom_call.1} parent=0 // pred_fallthru
    _
  // Predicated region
  $region14: #{tpu_custom_call.1} parent=0 // pred_check
    _
  $region15: #{tpu_custom_call.1} parent=0 // pred_check_branch
    %33 = sbr.rel (0) target = $region17
  $region16: #{tpu_custom_call.1} parent=0 // pred_region
    _
  $region17: #{tpu_custom_call.1} parent=0 // pred_fallthru
    _

</llo_original>
